<compile_context>
chip_gen: v7x
topology: tpu7x:2x2x1
jax: 0.10.0
libtpu: 0.0.40
codegen_flags: <defaults>
</compile_context>

<pallas_src>
import jax
import jax.numpy as jnp
from jax.experimental import pallas as pl
from jax.experimental.pallas import tpu as pltpu


def _sigmoid_mul_kernel(gate_ref, x_ref, o_ref):
    # gate_ref: (1, tile_c) lane-major gate slice (contiguous DMA).
    # x_ref / o_ref: (tile_c, hw) activation tile (channels on sublanes).
    g = gate_ref[...].astype(jnp.float32)           # ~tile_c/128 vregs
    s = 1.0 / (1.0 + jnp.exp(-g))                   # exp on EUP + exact divide
    # Lane -> sublane relayout of the tiny gate vector (XLU, ~tile_c/128 ops,
    # off the VPU / vld / vst critical slots), then lane-broadcast multiply.
    s_col = jnp.transpose(s)                        # (tile_c, 1)
    o_ref[...] = (s_col * x_ref[...]).astype(o_ref.dtype)


def sigmoid_mul(x905, x901, *, num_blocks=2, alias_x901=False):
    """x905: (1, C, 1, 1) gate, x901: (1, C, H, W) -> (1, C, H, W).

    alias_x901=True reuses x901's buffer for the output; only enable it when
    the caller donates x901 (otherwise XLA inserts a defensive full copy).
    """
    N, C, H, W = x901.shape
    assert x905.shape == (N, C, 1, 1)
    assert N == 1, "kernel written for N=1 (module semantics)"
    hw = H * W

    # tile_c must be a multiple of 128 so the (1, tile_c) gate block satisfies
    # the lane-divisibility rule and the (tile_c, hw) activation block satisfies
    # the sublane packing rule for any supported dtype; else use one block.
    if C % num_blocks != 0 or (C // num_blocks) % 128 != 0:
        num_blocks = 1
    tile_c = C // num_blocks

    x_flat = x901.reshape(C, hw)   # free reshape: channels->sublanes, spatial->lanes
    g_row = x905.reshape(1, C)     # free reshape: lane-major, contiguous in HBM

    x_bytes = C * hw * x901.dtype.itemsize
    cost = pl.CostEstimate(
        flops=C * hw + 4 * C,                 # one mul/elem + small sigmoid work
        transcendentals=C,                    # one exp per channel
        bytes_accessed=2 * x_bytes + C * x905.dtype.itemsize,
    )

    out_flat = pl.pallas_call(
        _sigmoid_mul_kernel,
        out_shape=jax.ShapeDtypeStruct((C, hw), x901.dtype),
        grid_spec=pltpu.PrefetchScalarGridSpec(
            num_scalar_prefetch=0,
            grid=(num_blocks,),
            in_specs=[
                pl.BlockSpec((1, tile_c), lambda i: (0, i)),    # lane-major gate
                pl.BlockSpec((tile_c, hw), lambda i: (i, 0)),   # activation block
            ],
            out_specs=pl.BlockSpec((tile_c, hw), lambda i: (i, 0)),
        ),
        cost_estimate=cost,
        input_output_aliases={1: 0} if alias_x901 else {},
        compiler_params=pltpu.CompilerParams(
            # Independent channel blocks: lets v7x shard blocks across its two
            # TensorCores; near-zero cost on single-TC v5e/v6e.
            dimension_semantics=("parallel",),
        ),
    )(g_row, x_flat)

    return out_flat.reshape(N, C, H, W)


if __name__ == "__main__":
    key = jax.random.PRNGKey(0)
    k1, k2 = jax.random.split(key)

    # Small shapes consistent with the module's squeeze-excite gate pattern:
    # activations (1, 256, 7, 7) NCHW, per-channel gate (1, 256, 1, 1).
    # (The real module uses C=2304; C=256 exercises the same 2-block path.)
    x901 = jax.random.normal(k1, (1, 256, 7, 7), dtype=jnp.float32)
    x905 = jax.random.normal(k2, (1, 256, 1, 1), dtype=jnp.float32)

    ref = jax.nn.sigmoid(x905) * x901

    out = jax.jit(sigmoid_mul)(x905, x901)
    out = jax.block_until_ready(out)

    assert out.shape == ref.shape
    assert jnp.allclose(out, ref, atol=1e-6, rtol=1e-6)

    print("KERNEL_OK")
</pallas_src>

<mosaic_0001>
module attributes {stable_mosaic.version = 11 : i64} {
  func.func @_sigmoid_mul_kernel(%arg0: i32, %arg1: memref<1x128xf32, #tpu.memory_space<vmem>>, %arg2: memref<128x49xf32, #tpu.memory_space<vmem>>, %arg3: memref<128x49xf32, #tpu.memory_space<vmem>>) attributes {dimension_semantics = [#tpu.dimension_semantics<parallel>], iteration_bounds = array<i64: 2>, scalar_prefetch = 0 : i64, scratch_operands = 0 : i64, tpu.core_type = #tpu.core_type<tc>, window_params = [{transform_indices = @transform_0, window_bounds = array<i64: 1, 128>}, {transform_indices = @transform_1, window_bounds = array<i64: 128, 49>}, {transform_indices = @transform_2, window_bounds = array<i64: 128, 49>}]} {
    %c0 = arith.constant 0 : index
    %c0_0 = arith.constant 0 : index
    %0 = vector.load %arg1[%c0, %c0_0] : memref<1x128xf32, #tpu.memory_space<vmem>>, vector<1x128xf32>
    %cst = arith.constant 0.000000e+00 : f32
    %1 = vector.broadcast %cst : f32 to vector<1x128xf32>
    %2 = arith.subf %1, %0 : vector<1x128xf32>
    %3 = math.exp %2 : vector<1x128xf32>
    %cst_1 = arith.constant 1.000000e+00 : f32
    %4 = vector.broadcast %cst_1 : f32 to vector<1x128xf32>
    %5 = arith.addf %4, %3 : vector<1x128xf32>
    %cst_2 = arith.constant 1.000000e+00 : f32
    %6 = vector.broadcast %cst_2 : f32 to vector<1x128xf32>
    %7 = arith.divf %6, %5 : vector<1x128xf32>
    %8 = tpu.transpose %7, [1, 0] : vector<1x128xf32> -> vector<128x1xf32>
    %c0_3 = arith.constant 0 : index
    %c0_4 = arith.constant 0 : index
    %9 = vector.load %arg2[%c0_3, %c0_4] : memref<128x49xf32, #tpu.memory_space<vmem>>, vector<128x49xf32>
    %10 = vector.broadcast %8 : vector<128x1xf32> to vector<128x49xf32>
    %11 = arith.mulf %10, %9 : vector<128x49xf32>
    %c0_5 = arith.constant 0 : index
    %c0_6 = arith.constant 0 : index
    %12 = vector.load %arg3[%c0_5, %c0_6] : memref<128x49xf32, #tpu.memory_space<vmem>>, vector<128x49xf32>
    tpu.vector_store %arg3[%c0_5, %c0_6], %11 {strides = array<i32>} : memref<128x49xf32, #tpu.memory_space<vmem>>, vector<128x49xf32>,
    return
  }
  func.func @transform_0(%arg0: i32) -> (i32, i32) {
    %c0_i32 = arith.constant 0 : i32
    %c0_i32_0 = arith.constant 0 : i32
    return %c0_i32, %arg0 : i32, i32
  }
  func.func @transform_1(%arg0: i32) -> (i32, i32) {
    %c0_i32 = arith.constant 0 : i32
    %c0_i32_0 = arith.constant 0 : i32
    return %arg0, %c0_i32 : i32, i32
  }
  func.func @transform_2(%arg0: i32) -> (i32, i32) {
    %c0_i32 = arith.constant 0 : i32
    %c0_i32_0 = arith.constant 0 : i32
    return %arg0, %c0_i32 : i32, i32
  }
}

</mosaic_0001>

<llo_original>
// kernel: sigmoid_mul.1
$region0: #{sigmoid_mul.1}
  #allocation0 [shape = 'u32[]', space=smem, size = 0x4, offset = 0x4, fixed_abs, tag = 'smem constant byte address 0x4 - core index']
  #allocation1 [shape = 'u32[144,128]{1,0:T(1,128)}', space=vmem, size = 0x12000, scoped, tag = 'internal scratch']
  %s0 = inlined_call_operand.vmem [shape: f32[1,256], index: 0, kind: input, shape index: {}]
  %s1 = inlined_call_operand.vmem [shape: f32[256,49], index: 1, kind: input, shape index: {}]
  %s2 = inlined_call_operand.vmem [shape: f32[256,49], index: 2, kind: output, shape index: {}]
  %s3 = sld [smem:[#allocation0]]
  $region41: #{sigmoid_mul.1} parent=0
    _
  %s5 = ssub.s32 1, %s3
  %s6 = scalar_select 0, %s5, %s3
  loop: start=0, step=1, limit=4
  $region2: #{sigmoid_mul.1} parent=0 // loop_pre_header
    _
  $region3: #{sigmoid_mul.1} parent=0 // loop_header
    %s8 = sphi 0, %s12
    %p9 = scmp.ge.s32.totalorder %s8, 4
    %s18 = sphi 0, %s20
    %s21 = sphi 0, %s18
    %s22 = sphi 0, %s21
    %s38 = sphi 0, %s22
    %s44 = sphi 0, %s46
    %s47 = sphi 0, %s44
    %s48 = sphi 0, %s47
    %s64 = sphi 0, %s48
    %s70 = sphi 0, %s72
    %s73 = sphi 0, %s70
    %s74 = sphi 0, %s73
    %s90 = sphi 0, %s74
  $region4: #{sigmoid_mul.1} parent=0 // loop_header_branch
    %11 = sbr.rel (%p9) target = $region8
  $region5: #{sigmoid_mul.1} parent=0 // loop_body
    %s13 = ssub.s32 %s8, 1
    %s14 = ssub.s32 %s8, 2
    %s15 = sadd.s32 %s8, 1
    %s16 = ssub.s32 %s8, %s15
    %p17 = scmp.eq.s32.totalorder %s16, 0
    %s19 = sadd.s32 %s18, 1
    %s20 = scalar_select %p17, %s18, %s19
    %p23 = pneg %p17
    %p24 = scmp.eq.s32.totalorder %s8, 1
    %p25 = por %p23, %p24
    %p26 = scmp.ne.s32.totalorder %s18, %s21
    %p27 = scmp.eq.s32.totalorder %s8, 0
    %p28 = por %p26, %p27
    %p29 = scmp.ne.s32.totalorder %s18, %s21
    %p30 = scmp.eq.s32.totalorder %s13, 1
    %p31 = por %p29, %p30
    %p32 = scmp.ne.s32.totalorder %s21, %s22
    %p33 = scmp.eq.s32.totalorder %s13, 0
    %p34 = por %p32, %p33
    %p35 = scmp.ne.s32.totalorder %s21, %s22
    %p36 = scmp.eq.s32.totalorder %s14, 1
    %p37 = por %p35, %p36
    %p39 = scmp.ne.s32.totalorder %s22, %s38
    %p40 = scmp.eq.s32.totalorder %s14, 0
    %p41 = por %p39, %p40
    %s42 = ssub.s32 %s8, %s15
    %p43 = scmp.eq.s32.totalorder %s42, 0
    %s45 = sadd.s32 %s44, 1
    %s46 = scalar_select %p43, %s44, %s45
    %p49 = pneg %p43
    %p50 = scmp.eq.s32.totalorder %s8, 1
    %p51 = por %p49, %p50
    %p52 = scmp.ne.s32.totalorder %s44, %s47
    %p53 = scmp.eq.s32.totalorder %s8, 0
    %p54 = por %p52, %p53
    %p55 = scmp.ne.s32.totalorder %s44, %s47
    %p56 = scmp.eq.s32.totalorder %s13, 1
    %p57 = por %p55, %p56
    %p58 = scmp.ne.s32.totalorder %s47, %s48
    %p59 = scmp.eq.s32.totalorder %s13, 0
    %p60 = por %p58, %p59
    %p61 = scmp.ne.s32.totalorder %s47, %s48
    %p62 = scmp.eq.s32.totalorder %s14, 1
    %p63 = por %p61, %p62
    %p65 = scmp.ne.s32.totalorder %s48, %s64
    %p66 = scmp.eq.s32.totalorder %s14, 0
    %p67 = por %p65, %p66
    %s68 = ssub.s32 %s8, %s15
    %p69 = scmp.eq.s32.totalorder %s68, 0
    %s71 = sadd.s32 %s70, 1
    %s72 = scalar_select %p69, %s70, %s71
    %p75 = pneg %p69
    %p76 = scmp.eq.s32.totalorder %s8, 1
    %p77 = por %p75, %p76
    %p78 = scmp.ne.s32.totalorder %s70, %s73
    %p79 = scmp.eq.s32.totalorder %s8, 0
    %p80 = por %p78, %p79
    %p81 = scmp.ne.s32.totalorder %s70, %s73
    %p82 = scmp.eq.s32.totalorder %s13, 1
    %p83 = por %p81, %p82
    %p84 = scmp.ne.s32.totalorder %s73, %s74
    %p85 = scmp.eq.s32.totalorder %s13, 0
    %p86 = por %p84, %p85
    %p87 = scmp.ne.s32.totalorder %s73, %s74
    %p88 = scmp.eq.s32.totalorder %s14, 1
    %p89 = por %p87, %p88
    %p91 = scmp.ne.s32.totalorder %s74, %s90
    %p92 = scmp.eq.s32.totalorder %s14, 0
    %p93 = por %p91, %p92
    %p94 = scmp.le.s32.totalorder 1, %s8
    %p95 = scmp.lt.s32.totalorder %s8, 3
    %p96 = pnand %p94, %p95
    %p97 = pneg %p96
    // Predicated region
    $region9: #{sigmoid_mul.1} parent=5 // pred_check
      _
    $region10: #{sigmoid_mul.1} parent=5 // pred_check_branch
      %99 = sbr.rel (%p96) target = $region12
    $region11: #{sigmoid_mul.1} parent=5 // pred_region
      %s100 = ssub.s32 %s8, 1
    $region12: #{sigmoid_mul.1} parent=5 // pred_fallthru
      _
    %p101 = scmp.lt.s32.totalorder %s8, 2
    // Predicated region
    $region13: #{sigmoid_mul.1} parent=5 // pred_check
      %p102 = pneg %p101
    $region14: #{sigmoid_mul.1} parent=5 // pred_check_branch
      %104 = sbr.rel (%p102) target = $region16
    $region15: #{sigmoid_mul.1} parent=5 // pred_region
      // Predicated region
      $region17: #{sigmoid_mul.1} parent=15 // pred_check
        %p105 = pneg %p28
      $region18: #{sigmoid_mul.1} parent=15 // pred_check_branch
        %107 = sbr.rel (%p105) target = $region20
      $region19: #{sigmoid_mul.1} parent=15 // pred_region
        %p108 = scmp.lt.s32.totalorder %s8, 1
        %s109 = scalar_select %p108, %s8, 1
        %s110 = scalar_lea.vmem %s0, %s109
      $region20: #{sigmoid_mul.1} parent=15 // pred_fallthru
        _
      // Predicated region
      $region21: #{sigmoid_mul.1} parent=15 // pred_check
        %p111 = pneg %p54
      $region22: #{sigmoid_mul.1} parent=15 // pred_check_branch
        %113 = sbr.rel (%p111) target = $region24
      $region23: #{sigmoid_mul.1} parent=15 // pred_region
        %s114 = smul.u32 16, %s8
        %p115 = scmp.lt.s32.totalorder %s114, 31
        %s116 = scalar_select %p115, %s114, 31
        %s117 = smul.addr %s116, 8
        %s118 = scalar_lea.vmem %s1, %s117
        %s119 = smul.u32 16, %s8
      $region24: #{sigmoid_mul.1} parent=15 // pred_fallthru
        _
    $region16: #{sigmoid_mul.1} parent=5 // pred_fallthru
      _
    %p120 = scmp.le.s32.totalorder 1, %s8
    %p121 = scmp.lt.s32.totalorder %s8, 3
    %p122 = pnand %p120, %p121
    %p123 = pneg %p122
    // Predicated region
    $region25: #{sigmoid_mul.1} parent=5 // pred_check
      _
    $region26: #{sigmoid_mul.1} parent=5 // pred_check_branch
      %125 = sbr.rel (%p122) target = $region28
    $region27: #{sigmoid_mul.1} parent=5 // pred_region
      %s126 = ssub.s32 %s8, 1
      %p127 = scmp.lt.s32.totalorder %s13, 1
      %s128 = scalar_select %p127, %s13, 1
      %s129 = scalar_lea.vmem %s0, %s128
      %p130 = pneg %p34
      %p131 = pneg %p31
      %s132 = smul.u32 16, %s13
      %p133 = scmp.lt.s32.totalorder %s132, 31
      %s134 = scalar_select %p133, %s132, 31
      %s135 = smul.addr %s134, 8
      %s136 = scalar_lea.vmem %s1, %s135
      %p137 = pneg %p60
      %p138 = pneg %p57
      %p139 = pneg %p86
      %p140 = pneg %p83
      %s141 = smul.u32 16, %s13
      %p142 = scmp.lt.s32.totalorder %s141, 31
      %s143 = scalar_select %p142, %s141, 31
      %s144 = smul.addr %s143, 8
      %s145 = scalar_lea.vmem %s2, %s144
      %p146 = scmp.lt.s32.totalorder %s13, 1
      %s147 = scalar_select %p146, %s13, 1
      %s148 = scalar_lea.vmem %s0, %s147
      %s149 = smul.u32 16, %s13
      %p150 = scmp.lt.s32.totalorder %s149, 31
      %s151 = scalar_select %p150, %s149, 31
      %s152 = smul.addr %s151, 8
      %s153 = scalar_lea.vmem %s1, %s152
      %s154 = smul.u32 16, %s13
      %s155 = smul.u32 16, %s13
      %p156 = scmp.lt.s32.totalorder %s155, 31
      %s157 = scalar_select %p156, %s155, 31
      %s158 = smul.addr %s157, 8
      %s159 = scalar_lea.vmem %s2, %s158
      %s160 = smul.u32 16, %s13
      %v161 = vld [vmem:[%s148] sm:$0x1]
      %v162 = vsub.f32 0.0, %v161
      %v163 = vmul.f32 %v162, 1.442695
      %v164 = vpow.pop %v163
      %v165 = vadd.f32 %v164, 1.0
      %v166 = vrcp.pop %v165
      %v167 = vmul.f32 1.0, %v166
      %168 = vxpose.xlu0.b32.start [1/16] %v167, 128
      %169 = vxpose.xlu0.b32.cont [2/16] 0.0, 128
      %170 = vxpose.xlu0.b32.cont [3/16] 0.0, 128
      %171 = vxpose.xlu0.b32.cont [4/16] 0.0, 128
      %172 = vxpose.xlu0.b32.cont [5/16] 0.0, 128
      %173 = vxpose.xlu0.b32.cont [6/16] 0.0, 128
      %174 = vxpose.xlu0.b32.cont [7/16] 0.0, 128
      %175 = vxpose.xlu0.b32.cont [8/16] 0.0, 128
      %176 = vxpose.xlu0.b32.cont [9/16] 0.0, 128
      %177 = vxpose.xlu0.b32.cont [10/16] 0.0, 128
      %178 = vxpose.xlu0.b32.cont [11/16] 0.0, 128
      %179 = vxpose.xlu0.b32.cont [12/16] 0.0, 128
      %180 = vxpose.xlu0.b32.cont [13/16] 0.0, 128
      %181 = vxpose.xlu0.b32.cont [14/16] 0.0, 128
      %182 = vxpose.xlu0.b32.cont [15/16] 0.0, 128
      %183 = vxpose.xlu0.b32.end [16/16] 0.0, 128
      %v184 = vpop.trf.xlu0
      %v185 = vpop.trf.xlu0
      %v186 = vpop.trf.xlu0
      %v187 = vpop.trf.xlu0
      %v188 = vpop.trf.xlu0
      %v189 = vpop.trf.xlu0
      %v190 = vpop.trf.xlu0
      %v191 = vpop.trf.xlu0
      %v192 = vpop.trf.xlu0
      %v193 = vpop.trf.xlu0
      %v194 = vpop.trf.xlu0
      %v195 = vpop.trf.xlu0
      %v196 = vpop.trf.xlu0
      %v197 = vpop.trf.xlu0
      %v198 = vpop.trf.xlu0
      %v199 = vpop.trf.xlu0
      %v200 = vld [vmem:[%s153] sm:$0xff]
      %v201 = vld [vmem:[%s153 + $0x8] sm:$0xff]
      %v202 = vld [vmem:[%s153 + $0x10] sm:$0xff]
      %v203 = vld [vmem:[%s153 + $0x18] sm:$0xff]
      %v204 = vld [vmem:[%s153 + $0x20] sm:$0xff]
      %v205 = vld [vmem:[%s153 + $0x28] sm:$0xff]
      %v206 = vld [vmem:[%s153 + $0x30] sm:$0xff]
      %v207 = vld [vmem:[%s153 + $0x38] sm:$0xff]
      %v208 = vld [vmem:[%s153 + $0x40] sm:$0xff]
      %v209 = vld [vmem:[%s153 + $0x48] sm:$0xff]
      %v210 = vld [vmem:[%s153 + $0x50] sm:$0xff]
      %v211 = vld [vmem:[%s153 + $0x58] sm:$0xff]
      %v212 = vld [vmem:[%s153 + $0x60] sm:$0xff]
      %v213 = vld [vmem:[%s153 + $0x68] sm:$0xff]
      %v214 = vld [vmem:[%s153 + $0x70] sm:$0xff]
      %v215 = vld [vmem:[%s153 + $0x78] sm:$0xff]
      %217 = vset.pattern.permute.xlu0 0
      %218 = vperm.xlu0 %217, %v184
      %v219 = vpop.permute.xlu0 %218
      %222 = vset.pattern.permute.xlu0 0
      %223 = vperm.xlu0 %222, %v185
      %v224 = vpop.permute.xlu0 %223
      %227 = vset.pattern.permute.xlu0 0
      %228 = vperm.xlu0 %227, %v186
      %v229 = vpop.permute.xlu0 %228
      %232 = vset.pattern.permute.xlu0 0
      %233 = vperm.xlu0 %232, %v187
      %v234 = vpop.permute.xlu0 %233
      %237 = vset.pattern.permute.xlu0 0
      %238 = vperm.xlu0 %237, %v188
      %v239 = vpop.permute.xlu0 %238
      %242 = vset.pattern.permute.xlu0 0
      %243 = vperm.xlu0 %242, %v189
      %v244 = vpop.permute.xlu0 %243
      %247 = vset.pattern.permute.xlu0 0
      %248 = vperm.xlu0 %247, %v190
      %v249 = vpop.permute.xlu0 %248
      %252 = vset.pattern.permute.xlu0 0
      %253 = vperm.xlu0 %252, %v191
      %v254 = vpop.permute.xlu0 %253
      %257 = vset.pattern.permute.xlu0 0
      %258 = vperm.xlu0 %257, %v192
      %v259 = vpop.permute.xlu0 %258
      %262 = vset.pattern.permute.xlu0 0
      %263 = vperm.xlu0 %262, %v193
      %v264 = vpop.permute.xlu0 %263
      %267 = vset.pattern.permute.xlu0 0
      %268 = vperm.xlu0 %267, %v194
      %v269 = vpop.permute.xlu0 %268
      %272 = vset.pattern.permute.xlu0 0
      %273 = vperm.xlu0 %272, %v195
      %v274 = vpop.permute.xlu0 %273
      %277 = vset.pattern.permute.xlu0 0
      %278 = vperm.xlu0 %277, %v196
      %v279 = vpop.permute.xlu0 %278
      %282 = vset.pattern.permute.xlu0 0
      %283 = vperm.xlu0 %282, %v197
      %v284 = vpop.permute.xlu0 %283
      %287 = vset.pattern.permute.xlu0 0
      %288 = vperm.xlu0 %287, %v198
      %v289 = vpop.permute.xlu0 %288
      %292 = vset.pattern.permute.xlu0 0
      %293 = vperm.xlu0 %292, %v199
      %v294 = vpop.permute.xlu0 %293
      %v296 = vmul.f32 %v219, %v200
      %v297 = vmul.f32 %v224, %v201
      %v298 = vmul.f32 %v229, %v202
      %v299 = vmul.f32 %v234, %v203
      %v300 = vmul.f32 %v239, %v204
      %v301 = vmul.f32 %v244, %v205
      %v302 = vmul.f32 %v249, %v206
      %v303 = vmul.f32 %v254, %v207
      %v304 = vmul.f32 %v259, %v208
      %v305 = vmul.f32 %v264, %v209
      %v306 = vmul.f32 %v269, %v210
      %v307 = vmul.f32 %v274, %v211
      %v308 = vmul.f32 %v279, %v212
      %v309 = vmul.f32 %v284, %v213
      %v310 = vmul.f32 %v289, %v214
      %v311 = vmul.f32 %v294, %v215
      %vm312 = vcmask 400384
      %313 = vst.msk [vmem:[%s159] sm:$0xff] %vm312, %v296
      %314 = vst.msk [vmem:[%s159 + $0x8] sm:$0xff] %vm312, %v297
      %315 = vst.msk [vmem:[%s159 + $0x10] sm:$0xff] %vm312, %v298
      %316 = vst.msk [vmem:[%s159 + $0x18] sm:$0xff] %vm312, %v299
      %317 = vst.msk [vmem:[%s159 + $0x20] sm:$0xff] %vm312, %v300
      %318 = vst.msk [vmem:[%s159 + $0x28] sm:$0xff] %vm312, %v301
      %319 = vst.msk [vmem:[%s159 + $0x30] sm:$0xff] %vm312, %v302
      %320 = vst.msk [vmem:[%s159 + $0x38] sm:$0xff] %vm312, %v303
      %321 = vst.msk [vmem:[%s159 + $0x40] sm:$0xff] %vm312, %v304
      %322 = vst.msk [vmem:[%s159 + $0x48] sm:$0xff] %vm312, %v305
      %323 = vst.msk [vmem:[%s159 + $0x50] sm:$0xff] %vm312, %v306
      %324 = vst.msk [vmem:[%s159 + $0x58] sm:$0xff] %vm312, %v307
      %325 = vst.msk [vmem:[%s159 + $0x60] sm:$0xff] %vm312, %v308
      %326 = vst.msk [vmem:[%s159 + $0x68] sm:$0xff] %vm312, %v309
      %327 = vst.msk [vmem:[%s159 + $0x70] sm:$0xff] %vm312, %v310
      %328 = vst.msk [vmem:[%s159 + $0x78] sm:$0xff] %vm312, %v311
      %s329 = smul.u32 16, %s13
      %p330 = scmp.lt.s32.totalorder %s329, 31
      %s331 = scalar_select %p330, %s329, 31
      %s332 = smul.addr %s331, 8
      %s333 = scalar_lea.vmem %s2, %s332
      // Predicated region
      $region29: #{sigmoid_mul.1} parent=27 // pred_check
        %p334 = pneg %p83
      $region30: #{sigmoid_mul.1} parent=27 // pred_check_branch
        %336 = sbr.rel (%p334) target = $region32
      $region31: #{sigmoid_mul.1} parent=27 // pred_region
        %s337 = smul.u32 16, %s13
      $region32: #{sigmoid_mul.1} parent=27 // pred_fallthru
        _
    $region28: #{sigmoid_mul.1} parent=5 // pred_fallthru
      _
    %p338 = scmp.le.s32.totalorder 2, %s8
    // Predicated region
    $region33: #{sigmoid_mul.1} parent=5 // pred_check
      %p339 = pneg %p338
    $region34: #{sigmoid_mul.1} parent=5 // pred_check_branch
      %341 = sbr.rel (%p339) target = $region36
    $region35: #{sigmoid_mul.1} parent=5 // pred_region
      %s342 = ssub.s32 %s8, 2
      // Predicated region
      $region37: #{sigmoid_mul.1} parent=35 // pred_check
        %p343 = pneg %p89
      $region38: #{sigmoid_mul.1} parent=35 // pred_check_branch
        %345 = sbr.rel (%p343) target = $region40
      $region39: #{sigmoid_mul.1} parent=35 // pred_region
        %s346 = smul.u32 16, %s14
        %p347 = scmp.lt.s32.totalorder %s346, 31
        %s348 = scalar_select %p347, %s346, 31
        %s349 = smul.addr %s348, 8
        %s350 = scalar_lea.vmem %s2, %s349
      $region40: #{sigmoid_mul.1} parent=35 // pred_fallthru
        _
    $region36: #{sigmoid_mul.1} parent=5 // pred_fallthru
      _
  $region6: #{sigmoid_mul.1} parent=0 // loop_footer
    %s12 = sadd.s32 1, %s8
  $region7: #{sigmoid_mul.1} parent=0 // loop_footer_branch
    %7 = sbr.rel target = $region3
  $region8: #{sigmoid_mul.1} parent=0 // loop_exit
    _

</llo_original>
